<compile_context>
chip_gen: v7x
topology: tpu7x:2x2x1
jax: 0.10.0
libtpu: 0.0.40
codegen_flags: <defaults>
</compile_context>

<pallas_src>
import functools

import jax
import jax.numpy as jnp
from jax import lax
from jax.experimental import pallas as pl
from jax.experimental.pallas import tpu as pltpu


def _round_up(n, m):
    return ((n + m - 1) // m) * m


def critic_kernel(x_ref, w1_ref, b1_ref, w2_ref, b2_ref, w3_ref, b3_ref,
                  v_ref, *, activation):
    """One batch tile of the 3-layer critic MLP.

    x_ref : (TILE_B, S)   matmul dtype (f32 or bf16)
    w1_ref: (S,  H1)      matmul dtype
    b1_ref: (1,  H1)      f32
    w2_ref: (H1, H2)      matmul dtype
    b2_ref: (1,  H2)      f32
    w3_ref: (1,  H2)      f32  (fc3 weight kept as a lane row)
    b3_ref: (1,  1)       f32
    v_ref : (1, TILE_B)   f32  lane-dense output row (batch on lanes)
    """
    # fc1 + activation: MXU matmul with f32 accumulation; bias add + act in f32.
    h1 = jnp.dot(x_ref[...], w1_ref[...],
                 preferred_element_type=jnp.float32) + b1_ref[...]
    h1 = activation(h1)

    # fc2 + activation: cast only the MXU operand to the weight dtype
    # (bf16 when enabled); VPU/EUP math stays f32.
    h1m = h1.astype(w2_ref.dtype)
    h2 = jnp.dot(h1m, w2_ref[...],
                 preferred_element_type=jnp.float32) + b2_ref[...]
    h2 = activation(h2)

    # fc3 as w3_row (1, H2) contracted with h2 (TILE_B, H2) on the last dim:
    # produces a lane-dense (1, TILE_B) row directly (same A·Bᵀ pattern as the
    # canonical flash-attention kernels), avoiding a masked (TILE_B, 1) store.
    v = lax.dot_general(w3_ref[...], h2, (((1,), (1,)), ((), ())),
                        preferred_element_type=jnp.float32) + b3_ref[...]
    v_ref[...] = v.astype(v_ref.dtype)


def critic_forward(x, params, *, tile_b=512, use_bf16_matmul=False,
                   activation=jnp.tanh):
    """x: (batch, state_dim) float32.  params: dict of w1,b1,w2,b2,w3,b3."""
    w1, b1, w2, b2, w3, b3 = (params[k] for k in ("w1", "b1", "w2", "b2", "w3", "b3"))
    B, S = x.shape
    H1 = w1.shape[1]
    H2 = w2.shape[1]

    # Batch tile: multiple of 128 (lane-dense output rows, sublane-aligned x
    # tiles), capped for small batches so tiny inputs don't over-pad.
    tile_b = max(128, _round_up(min(tile_b, max(B, 1)), 128))
    b_pad = _round_up(B, tile_b)
    if b_pad != B:
        x = jnp.pad(x, ((0, b_pad - B), (0, 0)))

    if use_bf16_matmul:
        # bf16 MXU operands (halves HBM traffic for x on v6e/v7x);
        # biases, accumulation, and the activation stay f32.
        x = x.astype(jnp.bfloat16)
        w1 = w1.astype(jnp.bfloat16)
        w2 = w2.astype(jnp.bfloat16)

    grid = (pl.cdiv(b_pad, tile_b),)
    kernel = functools.partial(critic_kernel, activation=activation)

    out = pl.pallas_call(
        kernel,
        out_shape=jax.ShapeDtypeStruct((1, b_pad), jnp.float32),
        grid=grid,
        in_specs=[
            pl.BlockSpec((tile_b, S), lambda i: (i, 0)),   # x: streamed per batch tile
            pl.BlockSpec((S, H1), lambda i: (0, 0)),       # weights/biases resident
            pl.BlockSpec((1, H1), lambda i: (0, 0)),
            pl.BlockSpec((H1, H2), lambda i: (0, 0)),
            pl.BlockSpec((1, H2), lambda i: (0, 0)),
            pl.BlockSpec((1, H2), lambda i: (0, 0)),
            pl.BlockSpec((1, 1), lambda i: (0, 0)),
        ],
        out_specs=pl.BlockSpec((1, tile_b), lambda i: (0, i)),
        compiler_params=pltpu.CompilerParams(
            dimension_semantics=("parallel",),  # shard batch tiles over v7x's 2 TCs
        ),
    )(x, w1, b1, w2, b2, w3, b3)

    return out[0, :B].reshape(B, 1)


def init_params(key, state_dim, net_dim):
    """Deterministic synthetic init. w1/w2 stored as (in, out) = torch W.T;
    w3 stored as the torch (1, H2) row; biases as (1, out) rows."""
    k1, k2, k3, k4, k5, k6 = jax.random.split(key, 6)
    h1, h2 = net_dim
    return {
        "w1": jax.random.normal(k1, (state_dim, h1), jnp.float32) * 0.1,
        "b1": jax.random.normal(k2, (1, h1), jnp.float32) * 0.1,
        "w2": jax.random.normal(k3, (h1, h2), jnp.float32) * 0.1,
        "b2": jax.random.normal(k4, (1, h2), jnp.float32) * 0.1,
        "w3": jax.random.normal(k5, (1, h2), jnp.float32) * 0.1,
        "b3": jax.random.normal(k6, (1, 1), jnp.float32) * 0.1,
    }


def critic_reference(x, params, activation=jnp.tanh):
    """Pure-JAX reference matching the PyTorch forward semantics."""
    h1 = activation(x @ params["w1"] + params["b1"])
    h2 = activation(h1 @ params["w2"] + params["b2"])
    return h2 @ params["w3"].T + params["b3"]


if __name__ == "__main__":
    key = jax.random.PRNGKey(0)
    kx, kp = jax.random.split(key)

    batch = 8
    state_dim = 16
    net_dim = (64, 32)

    # TODO(synk): the PyTorch Critic takes `activation` as a constructor arg;
    # tanh is used here — pass a different callable (e.g. jax.nn.relu) to match.
    x = jax.random.normal(kx, (batch, state_dim), jnp.float32)
    params = init_params(kp, state_dim, net_dim)

    # f32 path: exact semantics of the PyTorch module.
    v = jax.block_until_ready(critic_forward(x, params))
    v_ref = critic_reference(x, params)
    assert v.shape == (batch, 1), v.shape
    assert jnp.allclose(v, v_ref, atol=1e-5, rtol=1e-5), (v, v_ref)

    # bf16 MXU-operand path (v6e/v7x optimization; f32 bias/tanh).
    v_bf16 = jax.block_until_ready(critic_forward(x, params, use_bf16_matmul=True))
    assert v_bf16.shape == (batch, 1), v_bf16.shape
    assert jnp.allclose(v_bf16, v_ref, atol=2e-2, rtol=2e-2), (v_bf16, v_ref)

    # Larger, non-multiple-of-tile batch to exercise the multi-tile grid + padding.
    xb = jax.random.normal(kx, (1000, state_dim), jnp.float32)
    vb = jax.block_until_ready(critic_forward(xb, params, tile_b=256))
    vb_ref = critic_reference(xb, params)
    assert vb.shape == (1000, 1), vb.shape
    assert jnp.allclose(vb, vb_ref, atol=1e-5, rtol=1e-5)

    print("KERNEL_OK")
</pallas_src>

<mosaic_0001>
module attributes {stable_mosaic.version = 11 : i64} {
  func.func @critic_kernel(%arg0: i32, %arg1: memref<128x16xf32, #tpu.memory_space<vmem>>, %arg2: memref<16x64xf32, #tpu.memory_space<vmem>>, %arg3: memref<1x64xf32, #tpu.memory_space<vmem>>, %arg4: memref<64x32xf32, #tpu.memory_space<vmem>>, %arg5: memref<1x32xf32, #tpu.memory_space<vmem>>, %arg6: memref<1x32xf32, #tpu.memory_space<vmem>>, %arg7: memref<1x1xf32, #tpu.memory_space<vmem>>, %arg8: memref<1x128xf32, #tpu.memory_space<vmem>>) attributes {dimension_semantics = [#tpu.dimension_semantics<parallel>], iteration_bounds = array<i64: 1>, scalar_prefetch = 0 : i64, scratch_operands = 0 : i64, tpu.core_type = #tpu.core_type<tc>, window_params = [{transform_indices = @transform_0, window_bounds = array<i64: 128, 16>}, {pipeline_mode = #tpu.pipeline_mode<synchronous>, transform_indices = @transform_1, window_bounds = array<i64: 16, 64>}, {pipeline_mode = #tpu.pipeline_mode<synchronous>, transform_indices = @transform_2, window_bounds = array<i64: 1, 64>}, {pipeline_mode = #tpu.pipeline_mode<synchronous>, transform_indices = @transform_3, window_bounds = array<i64: 64, 32>}, {pipeline_mode = #tpu.pipeline_mode<synchronous>, transform_indices = @transform_4, window_bounds = array<i64: 1, 32>}, {pipeline_mode = #tpu.pipeline_mode<synchronous>, transform_indices = @transform_5, window_bounds = array<i64: 1, 32>}, {pipeline_mode = #tpu.pipeline_mode<synchronous>, transform_indices = @transform_6, window_bounds = array<i64: 1, 1>}, {transform_indices = @transform_7, window_bounds = array<i64: 1, 128>}]} {
    %c0 = arith.constant 0 : index
    %c0_0 = arith.constant 0 : index
    %0 = vector.load %arg1[%c0, %c0_0] : memref<128x16xf32, #tpu.memory_space<vmem>>, vector<128x16xf32>
    %c0_1 = arith.constant 0 : index
    %c0_2 = arith.constant 0 : index
    %1 = vector.load %arg2[%c0_1, %c0_2] : memref<16x64xf32, #tpu.memory_space<vmem>>, vector<16x64xf32>
    %cst = arith.constant dense<0.000000e+00> : vector<128x64xf32>
    %2 = tpu.matmul %0, %1, %cst {dimension_numbers = #tpu.dot_dimension_numbers<[1], [0], [0], [1], [0, 0, 1, 1], [], []>} : vector<128x16xf32>, vector<16x64xf32>, vector<128x64xf32> -> vector<128x64xf32>
    %c0_3 = arith.constant 0 : index
    %c0_4 = arith.constant 0 : index
    %3 = vector.load %arg3[%c0_3, %c0_4] : memref<1x64xf32, #tpu.memory_space<vmem>>, vector<1x64xf32>
    %4 = vector.broadcast %3 : vector<1x64xf32> to vector<128x64xf32>
    %5 = arith.addf %2, %4 : vector<128x64xf32>
    %6 = math.tanh %5 : vector<128x64xf32>
    %c0_5 = arith.constant 0 : index
    %c0_6 = arith.constant 0 : index
    %7 = vector.load %arg4[%c0_5, %c0_6] : memref<64x32xf32, #tpu.memory_space<vmem>>, vector<64x32xf32>
    %cst_7 = arith.constant dense<0.000000e+00> : vector<128x32xf32>
    %8 = tpu.matmul %6, %7, %cst_7 {dimension_numbers = #tpu.dot_dimension_numbers<[1], [0], [0], [1], [0, 0, 1, 1], [], []>} : vector<128x64xf32>, vector<64x32xf32>, vector<128x32xf32> -> vector<128x32xf32>
    %c0_8 = arith.constant 0 : index
    %c0_9 = arith.constant 0 : index
    %9 = vector.load %arg5[%c0_8, %c0_9] : memref<1x32xf32, #tpu.memory_space<vmem>>, vector<1x32xf32>
    %10 = vector.broadcast %9 : vector<1x32xf32> to vector<128x32xf32>
    %11 = arith.addf %8, %10 : vector<128x32xf32>
    %12 = math.tanh %11 : vector<128x32xf32>
    %c0_10 = arith.constant 0 : index
    %c0_11 = arith.constant 0 : index
    %13 = vector.load %arg6[%c0_10, %c0_11] : memref<1x32xf32, #tpu.memory_space<vmem>>, vector<1x32xf32>
    %cst_12 = arith.constant dense<0.000000e+00> : vector<1x128xf32>
    %14 = tpu.matmul %13, %12, %cst_12 {dimension_numbers = #tpu.dot_dimension_numbers<[1], [1], [0], [0], [0, 0, 1, 0], [], []>} : vector<1x32xf32>, vector<128x32xf32>, vector<1x128xf32> -> vector<1x128xf32>
    %c0_13 = arith.constant 0 : index
    %c0_14 = arith.constant 0 : index
    %15 = vector.load %arg7[%c0_13, %c0_14] : memref<1x1xf32, #tpu.memory_space<vmem>>, vector<1x1xf32>
    %16 = vector.broadcast %15 : vector<1x1xf32> to vector<1x128xf32>
    %17 = arith.addf %14, %16 : vector<1x128xf32>
    %c0_15 = arith.constant 0 : index
    %c0_16 = arith.constant 0 : index
    %18 = vector.load %arg8[%c0_15, %c0_16] : memref<1x128xf32, #tpu.memory_space<vmem>>, vector<1x128xf32>
    tpu.vector_store %arg8[%c0_15, %c0_16], %17 {strides = array<i32>} : memref<1x128xf32, #tpu.memory_space<vmem>>, vector<1x128xf32>,
    return
  }
  func.func @transform_0(%arg0: i32) -> (i32, i32) {
    %c0_i32 = arith.constant 0 : i32
    %c0_i32_0 = arith.constant 0 : i32
    return %arg0, %c0_i32 : i32, i32
  }
  func.func @transform_1(%arg0: i32) -> (i32, i32) {
    %c0_i32 = arith.constant 0 : i32
    %c0_i32_0 = arith.constant 0 : i32
    %c0_i32_1 = arith.constant 0 : i32
    return %c0_i32, %c0_i32_0 : i32, i32
  }
  func.func @transform_2(%arg0: i32) -> (i32, i32) {
    %c0_i32 = arith.constant 0 : i32
    %c0_i32_0 = arith.constant 0 : i32
    %c0_i32_1 = arith.constant 0 : i32
    return %c0_i32, %c0_i32_0 : i32, i32
  }
  func.func @transform_3(%arg0: i32) -> (i32, i32) {
    %c0_i32 = arith.constant 0 : i32
    %c0_i32_0 = arith.constant 0 : i32
    %c0_i32_1 = arith.constant 0 : i32
    return %c0_i32, %c0_i32_0 : i32, i32
  }
  func.func @transform_4(%arg0: i32) -> (i32, i32) {
    %c0_i32 = arith.constant 0 : i32
    %c0_i32_0 = arith.constant 0 : i32
    %c0_i32_1 = arith.constant 0 : i32
    return %c0_i32, %c0_i32_0 : i32, i32
  }
  func.func @transform_5(%arg0: i32) -> (i32, i32) {
    %c0_i32 = arith.constant 0 : i32
    %c0_i32_0 = arith.constant 0 : i32
    %c0_i32_1 = arith.constant 0 : i32
    return %c0_i32, %c0_i32_0 : i32, i32
  }
  func.func @transform_6(%arg0: i32) -> (i32, i32) {
    %c0_i32 = arith.constant 0 : i32
    %c0_i32_0 = arith.constant 0 : i32
    %c0_i32_1 = arith.constant 0 : i32
    return %c0_i32, %c0_i32_0 : i32, i32
  }
  func.func @transform_7(%arg0: i32) -> (i32, i32) {
    %c0_i32 = arith.constant 0 : i32
    %c0_i32_0 = arith.constant 0 : i32
    return %c0_i32, %arg0 : i32, i32
  }
}

</mosaic_0001>

<llo_original>
// kernel: tpu_custom_call.1
$region0: #{tpu_custom_call.1}
  #allocation0 [shape = 'u32[]', space=smem, size = 0x4, offset = 0x4, fixed_abs, tag = 'smem constant byte address 0x4 - core index']
  #allocation1 [shape = 'u32[144,128]{1,0:T(1,128)}', space=vmem, size = 0x12000, scoped, tag = 'internal scratch']
  #allocation2 [shape = 'f32[1,1]{1,0:T(1,128)S(1)}', space=vmem, size = 0x200, scoped, tag = 'scoped memory for tpu_custom_call.1']
  %s0 = inlined_call_operand.vmem [shape: f32[128,16], index: 0, kind: input, shape index: {}]
  %s1 = inlined_call_operand.vmem [shape: f32[16,64], index: 1, kind: input, shape index: {}]
  %s2 = inlined_call_operand.vmem [shape: f32[1,64], index: 2, kind: input, shape index: {}]
  %s3 = inlined_call_operand.vmem [shape: f32[64,32], index: 3, kind: input, shape index: {}]
  %s4 = inlined_call_operand.vmem [shape: f32[1,32], index: 4, kind: input, shape index: {}]
  %s5 = inlined_call_operand.vmem [shape: f32[1,32], index: 5, kind: input, shape index: {}]
  %s6 = inlined_call_operand.<no memory space> [shape: f32[1,1], index: 6, kind: input, shape index: {}]
  %s7 = inlined_call_operand.hbm [shape: f32[1,128], index: 7, kind: output, shape index: {}]
  %s8 = sld [smem:[#allocation0]]
  $region38: #{tpu_custom_call.1} parent=0
    _
  %s10 = ssub.s32 1, %s8
  %s11 = scalar_select 0, %s10, %s8
  %v12 = vstv %s6
  %13 = vst [vmem:[#allocation2] sm:$0x1] %v12
  $region1: #{tpu_custom_call.1} parent=0
    #allocation3 [shape = 'u8[512]{0}', space=vmem, size = 0x400, scoped, tag = 'output window, operand 0, single buffered']
    #allocation4 [shape = 's32[1]{0}', space=sflag, size = 0x4, scoped, tag = 'scoped memory for tpu_custom_call.1']
    %14 = vsyncpa [#allocation4], 0
    // Predicated region
    $region2: #{tpu_custom_call.1} parent=1 // pred_check
      _
    $region3: #{tpu_custom_call.1} parent=1 // pred_check_branch
      %16 = sbr.rel (0) target = $region5
    $region4: #{tpu_custom_call.1} parent=1 // pred_region
      _
    $region5: #{tpu_custom_call.1} parent=1 // pred_fallthru
      _
    // Predicated region
    $region6: #{tpu_custom_call.1} parent=1 // pred_check
      _
    $region7: #{tpu_custom_call.1} parent=1 // pred_check_branch
      %18 = sbr.rel (0) target = $region9
    $region8: #{tpu_custom_call.1} parent=1 // pred_region
      _
    $region9: #{tpu_custom_call.1} parent=1 // pred_fallthru
      _
    // Predicated region
    $region10: #{tpu_custom_call.1} parent=1 // pred_check
      _
    $region11: #{tpu_custom_call.1} parent=1 // pred_check_branch
      %20 = sbr.rel (0) target = $region13
    $region12: #{tpu_custom_call.1} parent=1 // pred_region
      _
    $region13: #{tpu_custom_call.1} parent=1 // pred_fallthru
      _
    // Predicated region
    $region14: #{tpu_custom_call.1} parent=1 // pred_check
      _
    $region15: #{tpu_custom_call.1} parent=1 // pred_check_branch
      %22 = sbr.rel (0) target = $region17
    $region16: #{tpu_custom_call.1} parent=1 // pred_region
      _
    $region17: #{tpu_custom_call.1} parent=1 // pred_fallthru
      _
    // Predicated region
    $region18: #{tpu_custom_call.1} parent=1 // pred_check
      _
    $region19: #{tpu_custom_call.1} parent=1 // pred_check_branch
      %24 = sbr.rel (0) target = $region21
    $region20: #{tpu_custom_call.1} parent=1 // pred_region
      _
    $region21: #{tpu_custom_call.1} parent=1 // pred_fallthru
      _
    // Predicated region
    $region22: #{tpu_custom_call.1} parent=1 // pred_check
      _
    $region23: #{tpu_custom_call.1} parent=1 // pred_check_branch
      %26 = sbr.rel (0) target = $region25
    $region24: #{tpu_custom_call.1} parent=1 // pred_region
      _
    $region25: #{tpu_custom_call.1} parent=1 // pred_fallthru
      _
    // Predicated region
    $region26: #{tpu_custom_call.1} parent=1 // pred_check
      _
    $region27: #{tpu_custom_call.1} parent=1 // pred_check_branch
      %28 = sbr.rel (0) target = $region29
    $region28: #{tpu_custom_call.1} parent=1 // pred_region
      _
    $region29: #{tpu_custom_call.1} parent=1 // pred_fallthru
      _
    %v29 = vld [vmem:[%s0] sm:$0xff]
    %v30 = vld [vmem:[%s0 + $0x8] sm:$0xff]
    %v31 = vld [vmem:[%s0 + $0x10] sm:$0xff]
    %v32 = vld [vmem:[%s0 + $0x18] sm:$0xff]
    %v33 = vld [vmem:[%s0 + $0x20] sm:$0xff]
    %v34 = vld [vmem:[%s0 + $0x28] sm:$0xff]
    %v35 = vld [vmem:[%s0 + $0x30] sm:$0xff]
    %v36 = vld [vmem:[%s0 + $0x38] sm:$0xff]
    %v37 = vld [vmem:[%s0 + $0x40] sm:$0xff]
    %v38 = vld [vmem:[%s0 + $0x48] sm:$0xff]
    %v39 = vld [vmem:[%s0 + $0x50] sm:$0xff]
    %v40 = vld [vmem:[%s0 + $0x58] sm:$0xff]
    %v41 = vld [vmem:[%s0 + $0x60] sm:$0xff]
    %v42 = vld [vmem:[%s0 + $0x68] sm:$0xff]
    %v43 = vld [vmem:[%s0 + $0x70] sm:$0xff]
    %v44 = vld [vmem:[%s0 + $0x78] sm:$0xff]
    %v45 = vld [vmem:[%s1] sm:$0xff]
    %v46 = vld [vmem:[%s1 + $0x8] sm:$0xff]
    %v47 = vld [vmem:[%s2] sm:$0x1]
    %v49 = vlaneseq
    %v50 = vshrl.u32 %v49, 7
    %v51 = vsub.s32 0, %v50
    %v52 = vrot.slane %v47, %v51
    %vm54 = vcmask 130048
    %v56 = vsel %vm54, %v29, 0
    %v59 = vsel %vm54, %v30, 0
    %v62 = vsel %vm54, %v31, 0
    %v65 = vsel %vm54, %v32, 0
    %v68 = vsel %vm54, %v33, 0
    %v71 = vsel %vm54, %v34, 0
    %v74 = vsel %vm54, %v35, 0
    %v77 = vsel %vm54, %v36, 0
    %v80 = vsel %vm54, %v37, 0
    %v83 = vsel %vm54, %v38, 0
    %v86 = vsel %vm54, %v39, 0
    %v89 = vsel %vm54, %v40, 0
    %v92 = vsel %vm54, %v41, 0
    %v95 = vsel %vm54, %v42, 0
    %v98 = vsel %vm54, %v43, 0
    %v101 = vsel %vm54, %v44, 0
    %103 = vmatprep.subr.mxu0 0.0
    %104 = vmatpush1.msra.mxu0 %v45
    %105 = vmatprep.subr.mxu0 0.0
    %106 = vmatpush1.msra.mxu0 %v46
    %107 = vmatprep.subr.mxu0 0.0
    %108 = vmatpush1.msra.mxu0 0.0
    %109 = vmatprep.subr.mxu0 0.0
    %110 = vmatpush1.msra.mxu0 0.0
    %111 = vmatprep.subr.mxu0 0.0
    %112 = vmatpush1.msra.mxu0 0.0
    %113 = vmatprep.subr.mxu0 0.0
    %114 = vmatpush1.msra.mxu0 0.0
    %115 = vmatprep.subr.mxu0 0.0
    %116 = vmatpush1.msra.mxu0 0.0
    %117 = vmatprep.subr.mxu0 0.0
    %118 = vmatpush1.msra.mxu0 0.0
    %119 = vmatprep.subr.mxu0 0.0
    %120 = vmatpush1.msra.mxu0 0.0
    %121 = vmatprep.subr.mxu0 0.0
    %122 = vmatpush1.msra.mxu0 0.0
    %123 = vmatprep.subr.mxu0 0.0
    %124 = vmatpush1.msra.mxu0 0.0
    %125 = vmatprep.subr.mxu0 0.0
    %126 = vmatpush1.msra.mxu0 0.0
    %127 = vmatprep.subr.mxu0 0.0
    %128 = vmatpush1.msra.mxu0 0.0
    %129 = vmatprep.subr.mxu0 0.0
    %130 = vmatpush1.msra.mxu0 0.0
    %131 = vmatprep.subr.mxu0 0.0
    %132 = vmatpush1.msra.mxu0 0.0
    %133 = vmatprep.subr.mxu0 0.0
    %134 = vmatpush1.msra.mxu0 0.0
    %135 = vmatprep.subr.mxu0 0.0
    %136 = vmatpush1.msra.mxu0 0.0
    %137 = vmatprep.subr.mxu0 0.0
    %138 = vmatpush1.msra.mxu0 0.0
    %139 = vmatprep.subr.mxu0 0.0
    %140 = vmatpush1.msra.mxu0 0.0
    %141 = vmatprep.subr.mxu0 0.0
    %142 = vmatpush1.msra.mxu0 0.0
    %143 = vmatprep.subr.mxu0 0.0
    %144 = vmatpush1.msra.mxu0 0.0
    %145 = vmatprep.subr.mxu0 0.0
    %146 = vmatpush1.msra.mxu0 0.0
    %147 = vmatprep.subr.mxu0 0.0
    %148 = vmatpush1.msra.mxu0 0.0
    %149 = vmatprep.subr.mxu0 0.0
    %150 = vmatpush1.msra.mxu0 0.0
    %151 = vmatprep.subr.mxu0 0.0
    %152 = vmatpush1.msra.mxu0 0.0
    %153 = vmatprep.subr.mxu0 0.0
    %154 = vmatpush1.msra.mxu0 0.0
    %155 = vmatprep.subr.mxu0 0.0
    %156 = vmatpush1.msra.mxu0 0.0
    %157 = vmatprep.subr.mxu0 0.0
    %158 = vmatpush1.msra.mxu0 0.0
    %159 = vmatprep.subr.mxu0 0.0
    %160 = vmatpush1.msra.mxu0 0.0
    %161 = vmatprep.subr.mxu0 0.0
    %162 = vmatpush1.msra.mxu0 0.0
    %163 = vmatprep.subr.mxu0 0.0
    %164 = vmatpush1.msra.mxu0 0.0
    %165 = vmatprep.subr.mxu0 0.0
    %166 = vmatpush1.msra.mxu0 0.0
    %167 = vmatprep.mubr.f32.mxu0 0.0
    %168 = vmatmul.mubr.f32.gmra.mrb[0].mxu0 %v56
    %v169 = vpop.f32.mrb[0].mxu0
    %v170 = vadd.f32 %v52, %v169
    %v171 = vpop.f32.mrb[0].mxu0
    %172 = vmatprep.mubr.f32.mxu0 0.0
    %173 = vmatmul.mubr.f32.gmra.mrb[0].mxu0 %v59
    %v174 = vpop.f32.mrb[0].mxu0
    %v175 = vadd.f32 %v52, %v174
    %v176 = vpop.f32.mrb[0].mxu0
    %177 = vmatprep.mubr.f32.mxu0 0.0
    %178 = vmatmul.mubr.f32.gmra.mrb[0].mxu0 %v62
    %v179 = vpop.f32.mrb[0].mxu0
    %v180 = vadd.f32 %v52, %v179
    %v181 = vpop.f32.mrb[0].mxu0
    %182 = vmatprep.mubr.f32.mxu0 0.0
    %183 = vmatmul.mubr.f32.gmra.mrb[0].mxu0 %v65
    %v184 = vpop.f32.mrb[0].mxu0
    %v185 = vadd.f32 %v52, %v184
    %v186 = vpop.f32.mrb[0].mxu0
    %187 = vmatprep.mubr.f32.mxu0 0.0
    %188 = vmatmul.mubr.f32.gmra.mrb[0].mxu0 %v68
    %v189 = vpop.f32.mrb[0].mxu0
    %v190 = vadd.f32 %v52, %v189
    %v191 = vpop.f32.mrb[0].mxu0
    %192 = vmatprep.mubr.f32.mxu0 0.0
    %193 = vmatmul.mubr.f32.gmra.mrb[0].mxu0 %v71
    %v194 = vpop.f32.mrb[0].mxu0
    %v195 = vadd.f32 %v52, %v194
    %v196 = vpop.f32.mrb[0].mxu0
    %197 = vmatprep.mubr.f32.mxu0 0.0
    %198 = vmatmul.mubr.f32.gmra.mrb[0].mxu0 %v74
    %v199 = vpop.f32.mrb[0].mxu0
    %v200 = vadd.f32 %v52, %v199
    %v201 = vpop.f32.mrb[0].mxu0
    %202 = vmatprep.mubr.f32.mxu0 0.0
    %203 = vmatmul.mubr.f32.gmra.mrb[0].mxu0 %v77
    %v204 = vpop.f32.mrb[0].mxu0
    %v205 = vadd.f32 %v52, %v204
    %v206 = vpop.f32.mrb[0].mxu0
    %207 = vmatprep.mubr.f32.mxu0 0.0
    %208 = vmatmul.mubr.f32.gmra.mrb[0].mxu0 %v80
    %v209 = vpop.f32.mrb[0].mxu0
    %v210 = vadd.f32 %v52, %v209
    %v211 = vpop.f32.mrb[0].mxu0
    %212 = vmatprep.mubr.f32.mxu0 0.0
    %213 = vmatmul.mubr.f32.gmra.mrb[0].mxu0 %v83
    %v214 = vpop.f32.mrb[0].mxu0
    %v215 = vadd.f32 %v52, %v214
    %v216 = vpop.f32.mrb[0].mxu0
    %217 = vmatprep.mubr.f32.mxu0 0.0
    %218 = vmatmul.mubr.f32.gmra.mrb[0].mxu0 %v86
    %v219 = vpop.f32.mrb[0].mxu0
    %v220 = vadd.f32 %v52, %v219
    %v221 = vpop.f32.mrb[0].mxu0
    %222 = vmatprep.mubr.f32.mxu0 0.0
    %223 = vmatmul.mubr.f32.gmra.mrb[0].mxu0 %v89
    %v224 = vpop.f32.mrb[0].mxu0
    %v225 = vadd.f32 %v52, %v224
    %v226 = vpop.f32.mrb[0].mxu0
    %227 = vmatprep.mubr.f32.mxu0 0.0
    %228 = vmatmul.mubr.f32.gmra.mrb[0].mxu0 %v92
    %v229 = vpop.f32.mrb[0].mxu0
    %v230 = vadd.f32 %v52, %v229
    %v231 = vpop.f32.mrb[0].mxu0
    %232 = vmatprep.mubr.f32.mxu0 0.0
    %233 = vmatmul.mubr.f32.gmra.mrb[0].mxu0 %v95
    %v234 = vpop.f32.mrb[0].mxu0
    %v235 = vadd.f32 %v52, %v234
    %v236 = vpop.f32.mrb[0].mxu0
    %237 = vmatprep.mubr.f32.mxu0 0.0
    %238 = vmatmul.mubr.f32.gmra.mrb[0].mxu0 %v98
    %v239 = vpop.f32.mrb[0].mxu0
    %v240 = vadd.f32 %v52, %v239
    %v241 = vpop.f32.mrb[0].mxu0
    %242 = vmatprep.mubr.f32.mxu0 0.0
    %243 = vmatmul.mubr.f32.gmra.mrb[0].mxu0 %v101
    %v244 = vpop.f32.mrb[0].mxu0
    %v245 = vadd.f32 %v52, %v244
    %v246 = vpop.f32.mrb[0].mxu0
    %247 = vdwg.mxu0
    %v248 = vtanh.pop %v170
    %v249 = vtanh.pop %v175
    %v250 = vtanh.pop %v180
    %v251 = vtanh.pop %v185
    %v252 = vtanh.pop %v190
    %v253 = vtanh.pop %v195
    %v254 = vtanh.pop %v200
    %v255 = vtanh.pop %v205
    %v256 = vtanh.pop %v210
    %v257 = vtanh.pop %v215
    %v258 = vtanh.pop %v220
    %v259 = vtanh.pop %v225
    %v260 = vtanh.pop %v230
    %v261 = vtanh.pop %v235
    %v262 = vtanh.pop %v240
    %v263 = vtanh.pop %v245
    %v264 = vld [vmem:[%s3] sm:$0xff]
    %v265 = vld [vmem:[%s3 + $0x8] sm:$0xff]
    %v266 = vld [vmem:[%s3 + $0x10] sm:$0xff]
    %v267 = vld [vmem:[%s3 + $0x18] sm:$0xff]
    %v268 = vld [vmem:[%s3 + $0x20] sm:$0xff]
    %v269 = vld [vmem:[%s3 + $0x28] sm:$0xff]
    %v270 = vld [vmem:[%s3 + $0x30] sm:$0xff]
    %v271 = vld [vmem:[%s3 + $0x38] sm:$0xff]
    %v272 = vld [vmem:[%s4] sm:$0x1]
    %v274 = vlaneseq
    %v275 = vshrl.u32 %v274, 7
    %v276 = vsub.s32 0, %v275
    %v277 = vrot.slane %v272, %v276
    %vm279 = vcmask 523264
    %v281 = vsel %vm279, %v248, 0
    %v284 = vsel %vm279, %v249, 0
    %v287 = vsel %vm279, %v250, 0
    %v290 = vsel %vm279, %v251, 0
    %v293 = vsel %vm279, %v252, 0
    %v296 = vsel %vm279, %v253, 0
    %v299 = vsel %vm279, %v254, 0
    %v302 = vsel %vm279, %v255, 0
    %v305 = vsel %vm279, %v256, 0
    %v308 = vsel %vm279, %v257, 0
    %v311 = vsel %vm279, %v258, 0
    %v314 = vsel %vm279, %v259, 0
    %v317 = vsel %vm279, %v260, 0
    %v320 = vsel %vm279, %v261, 0
    %v323 = vsel %vm279, %v262, 0
    %v326 = vsel %vm279, %v263, 0
    %328 = vmatprep.subr.mxu0 0.0
    %329 = vmatpush1.msra.mxu0 %v264
    %330 = vmatprep.subr.mxu0 0.0
    %331 = vmatpush1.msra.mxu0 %v265
    %332 = vmatprep.subr.mxu0 0.0
    %333 = vmatpush1.msra.mxu0 %v266
    %334 = vmatprep.subr.mxu0 0.0
    %335 = vmatpush1.msra.mxu0 %v267
    %336 = vmatprep.subr.mxu0 0.0
    %337 = vmatpush1.msra.mxu0 %v268
    %338 = vmatprep.subr.mxu0 0.0
    %339 = vmatpush1.msra.mxu0 %v269
    %340 = vmatprep.subr.mxu0 0.0
    %341 = vmatpush1.msra.mxu0 %v270
    %342 = vmatprep.subr.mxu0 0.0
    %343 = vmatpush1.msra.mxu0 %v271
    %344 = vmatprep.subr.mxu0 0.0
    %345 = vmatpush1.msra.mxu0 0.0
    %346 = vmatprep.subr.mxu0 0.0
    %347 = vmatpush1.msra.mxu0 0.0
    %348 = vmatprep.subr.mxu0 0.0
    %349 = vmatpush1.msra.mxu0 0.0
    %350 = vmatprep.subr.mxu0 0.0
    %351 = vmatpush1.msra.mxu0 0.0
    %352 = vmatprep.subr.mxu0 0.0
    %353 = vmatpush1.msra.mxu0 0.0
    %354 = vmatprep.subr.mxu0 0.0
    %355 = vmatpush1.msra.mxu0 0.0
    %356 = vmatprep.subr.mxu0 0.0
    %357 = vmatpush1.msra.mxu0 0.0
    %358 = vmatprep.subr.mxu0 0.0
    %359 = vmatpush1.msra.mxu0 0.0
    %360 = vmatprep.subr.mxu0 0.0
    %361 = vmatpush1.msra.mxu0 0.0
    %362 = vmatprep.subr.mxu0 0.0
    %363 = vmatpush1.msra.mxu0 0.0
    %364 = vmatprep.subr.mxu0 0.0
    %365 = vmatpush1.msra.mxu0 0.0
    %366 = vmatprep.subr.mxu0 0.0
    %367 = vmatpush1.msra.mxu0 0.0
    %368 = vmatprep.subr.mxu0 0.0
    %369 = vmatpush1.msra.mxu0 0.0
    %370 = vmatprep.subr.mxu0 0.0
    %371 = vmatpush1.msra.mxu0 0.0
    %372 = vmatprep.subr.mxu0 0.0
    %373 = vmatpush1.msra.mxu0 0.0
    %374 = vmatprep.subr.mxu0 0.0
    %375 = vmatpush1.msra.mxu0 0.0
    %376 = vmatprep.subr.mxu0 0.0
    %377 = vmatpush1.msra.mxu0 0.0
    %378 = vmatprep.subr.mxu0 0.0
    %379 = vmatpush1.msra.mxu0 0.0
    %380 = vmatprep.subr.mxu0 0.0
    %381 = vmatpush1.msra.mxu0 0.0
    %382 = vmatprep.subr.mxu0 0.0
    %383 = vmatpush1.msra.mxu0 0.0
    %384 = vmatprep.subr.mxu0 0.0
    %385 = vmatpush1.msra.mxu0 0.0
    %386 = vmatprep.subr.mxu0 0.0
    %387 = vmatpush1.msra.mxu0 0.0
    %388 = vmatprep.subr.mxu0 0.0
    %389 = vmatpush1.msra.mxu0 0.0
    %390 = vmatprep.subr.mxu0 0.0
    %391 = vmatpush1.msra.mxu0 0.0
    %392 = vmatprep.mubr.f32.mxu0 0.0
    %393 = vmatmul.mubr.f32.gmra.mrb[0].mxu0 %v281
    %v394 = vpop.f32.mrb[0].mxu0
    %v395 = vadd.f32 %v277, %v394
    %v396 = vpop.f32.mrb[0].mxu0
    %397 = vmatprep.mubr.f32.mxu0 0.0
    %398 = vmatmul.mubr.f32.gmra.mrb[0].mxu0 %v284
    %v399 = vpop.f32.mrb[0].mxu0
    %v400 = vadd.f32 %v277, %v399
    %v401 = vpop.f32.mrb[0].mxu0
    %402 = vmatprep.mubr.f32.mxu0 0.0
    %403 = vmatmul.mubr.f32.gmra.mrb[0].mxu0 %v287
    %v404 = vpop.f32.mrb[0].mxu0
    %v405 = vadd.f32 %v277, %v404
    %v406 = vpop.f32.mrb[0].mxu0
    %407 = vmatprep.mubr.f32.mxu0 0.0
    %408 = vmatmul.mubr.f32.gmra.mrb[0].mxu0 %v290
    %v409 = vpop.f32.mrb[0].mxu0
    %v410 = vadd.f32 %v277, %v409
    %v411 = vpop.f32.mrb[0].mxu0
    %412 = vmatprep.mubr.f32.mxu0 0.0
    %413 = vmatmul.mubr.f32.gmra.mrb[0].mxu0 %v293
    %v414 = vpop.f32.mrb[0].mxu0
    %v415 = vadd.f32 %v277, %v414
    %v416 = vpop.f32.mrb[0].mxu0
    %417 = vmatprep.mubr.f32.mxu0 0.0
    %418 = vmatmul.mubr.f32.gmra.mrb[0].mxu0 %v296
    %v419 = vpop.f32.mrb[0].mxu0
    %v420 = vadd.f32 %v277, %v419
    %v421 = vpop.f32.mrb[0].mxu0
    %422 = vmatprep.mubr.f32.mxu0 0.0
    %423 = vmatmul.mubr.f32.gmra.mrb[0].mxu0 %v299
    %v424 = vpop.f32.mrb[0].mxu0
    %v425 = vadd.f32 %v277, %v424
    %v426 = vpop.f32.mrb[0].mxu0
    %427 = vmatprep.mubr.f32.mxu0 0.0
    %428 = vmatmul.mubr.f32.gmra.mrb[0].mxu0 %v302
    %v429 = vpop.f32.mrb[0].mxu0
    %v430 = vadd.f32 %v277, %v429
    %v431 = vpop.f32.mrb[0].mxu0
    %432 = vmatprep.mubr.f32.mxu0 0.0
    %433 = vmatmul.mubr.f32.gmra.mrb[0].mxu0 %v305
    %v434 = vpop.f32.mrb[0].mxu0
    %v435 = vadd.f32 %v277, %v434
    %v436 = vpop.f32.mrb[0].mxu0
    %437 = vmatprep.mubr.f32.mxu0 0.0
    %438 = vmatmul.mubr.f32.gmra.mrb[0].mxu0 %v308
    %v439 = vpop.f32.mrb[0].mxu0
    %v440 = vadd.f32 %v277, %v439
    %v441 = vpop.f32.mrb[0].mxu0
    %442 = vmatprep.mubr.f32.mxu0 0.0
    %443 = vmatmul.mubr.f32.gmra.mrb[0].mxu0 %v311
    %v444 = vpop.f32.mrb[0].mxu0
    %v445 = vadd.f32 %v277, %v444
    %v446 = vpop.f32.mrb[0].mxu0
    %447 = vmatprep.mubr.f32.mxu0 0.0
    %448 = vmatmul.mubr.f32.gmra.mrb[0].mxu0 %v314
    %v449 = vpop.f32.mrb[0].mxu0
    %v450 = vadd.f32 %v277, %v449
    %v451 = vpop.f32.mrb[0].mxu0
    %452 = vmatprep.mubr.f32.mxu0 0.0
    %453 = vmatmul.mubr.f32.gmra.mrb[0].mxu0 %v317
    %v454 = vpop.f32.mrb[0].mxu0
    %v455 = vadd.f32 %v277, %v454
    %v456 = vpop.f32.mrb[0].mxu0
    %457 = vmatprep.mubr.f32.mxu0 0.0
    %458 = vmatmul.mubr.f32.gmra.mrb[0].mxu0 %v320
    %v459 = vpop.f32.mrb[0].mxu0
    %v460 = vadd.f32 %v277, %v459
    %v461 = vpop.f32.mrb[0].mxu0
    %462 = vmatprep.mubr.f32.mxu0 0.0
    %463 = vmatmul.mubr.f32.gmra.mrb[0].mxu0 %v323
    %v464 = vpop.f32.mrb[0].mxu0
    %v465 = vadd.f32 %v277, %v464
    %v466 = vpop.f32.mrb[0].mxu0
    %467 = vmatprep.mubr.f32.mxu0 0.0
    %468 = vmatmul.mubr.f32.gmra.mrb[0].mxu0 %v326
    %v469 = vpop.f32.mrb[0].mxu0
    %v470 = vadd.f32 %v277, %v469
    %v471 = vpop.f32.mrb[0].mxu0
    %472 = vdwg.mxu0
    %v473 = vtanh.pop %v395
    %v474 = vtanh.pop %v400
    %v475 = vtanh.pop %v405
    %v476 = vtanh.pop %v410
    %v477 = vtanh.pop %v415
    %v478 = vtanh.pop %v420
    %v479 = vtanh.pop %v425
    %v480 = vtanh.pop %v430
    %v481 = vtanh.pop %v435
    %v482 = vtanh.pop %v440
    %v483 = vtanh.pop %v445
    %v484 = vtanh.pop %v450
    %v485 = vtanh.pop %v455
    %v486 = vtanh.pop %v460
    %v487 = vtanh.pop %v465
    %v488 = vtanh.pop %v470
    %v489 = vld [vmem:[%s5] sm:$0x1]
    %v490 = vld [vmem:[#allocation2] sm:$0x1]
    %492 = vset.pattern.permute.xlu0 0
    %493 = vperm.xlu0 %492, %v490
    %v494 = vpop.permute.xlu0 %493
    %v496 = vlaneseq
    %v497 = vshrl.u32 %v496, 7
    %v498 = vsub.s32 0, %v497
    %v499 = vrot.slane %v494, %v498
    %vm500 = vcmask 261120
    %v502 = vsel %vm500, %v489, 0
    %v505 = vsel %vm500, %v473, 0
    %v508 = vsel %vm500, %v474, 0
    %v511 = vsel %vm500, %v475, 0
    %v514 = vsel %vm500, %v476, 0
    %v517 = vsel %vm500, %v477, 0
    %v520 = vsel %vm500, %v478, 0
    %v523 = vsel %vm500, %v479, 0
    %v526 = vsel %vm500, %v480, 0
    %v529 = vsel %vm500, %v481, 0
    %v532 = vsel %vm500, %v482, 0
    %v535 = vsel %vm500, %v483, 0
    %v538 = vsel %vm500, %v484, 0
    %v541 = vsel %vm500, %v485, 0
    %v544 = vsel %vm500, %v486, 0
    %v547 = vsel %vm500, %v487, 0
    %v550 = vsel %vm500, %v488, 0
    %552 = vmatprep.subr.mxu0 0.0
    %553 = vmatpush1.xpose.msra.mxu0 %v505
    %554 = vmatprep.subr.mxu0 0.0
    %555 = vmatpush1.xpose.msra.mxu0 %v508
    %556 = vmatprep.subr.mxu0 0.0
    %557 = vmatpush1.xpose.msra.mxu0 %v511
    %558 = vmatprep.subr.mxu0 0.0
    %559 = vmatpush1.xpose.msra.mxu0 %v514
    %560 = vmatprep.subr.mxu0 0.0
    %561 = vmatpush1.xpose.msra.mxu0 %v517
    %562 = vmatprep.subr.mxu0 0.0
    %563 = vmatpush1.xpose.msra.mxu0 %v520
    %564 = vmatprep.subr.mxu0 0.0
    %565 = vmatpush1.xpose.msra.mxu0 %v523
    %566 = vmatprep.subr.mxu0 0.0
    %567 = vmatpush1.xpose.msra.mxu0 %v526
    %568 = vmatprep.subr.mxu0 0.0
    %569 = vmatpush1.xpose.msra.mxu0 %v529
    %570 = vmatprep.subr.mxu0 0.0
    %571 = vmatpush1.xpose.msra.mxu0 %v532
    %572 = vmatprep.subr.mxu0 0.0
    %573 = vmatpush1.xpose.msra.mxu0 %v535
    %574 = vmatprep.subr.mxu0 0.0
    %575 = vmatpush1.xpose.msra.mxu0 %v538
    %576 = vmatprep.subr.mxu0 0.0
    %577 = vmatpush1.xpose.msra.mxu0 %v541
    %578 = vmatprep.subr.mxu0 0.0
    %579 = vmatpush1.xpose.msra.mxu0 %v544
    %580 = vmatprep.subr.mxu0 0.0
    %581 = vmatpush1.xpose.msra.mxu0 %v547
    %582 = vmatprep.subr.mxu0 0.0
    %583 = vmatpush1.xpose.msra.mxu0 %v550
    %584 = vmatprep.subr.mxu0 0.0
    %585 = vmatpush1.xpose.msra.mxu0 0.0
    %586 = vmatprep.subr.mxu0 0.0
    %587 = vmatpush1.xpose.msra.mxu0 0.0
    %588 = vmatprep.subr.mxu0 0.0
    %589 = vmatpush1.xpose.msra.mxu0 0.0
    %590 = vmatprep.subr.mxu0 0.0
    %591 = vmatpush1.xpose.msra.mxu0 0.0
    %592 = vmatprep.subr.mxu0 0.0
    %593 = vmatpush1.xpose.msra.mxu0 0.0
    %594 = vmatprep.subr.mxu0 0.0
    %595 = vmatpush1.xpose.msra.mxu0 0.0
    %596 = vmatprep.subr.mxu0 0.0
    %597 = vmatpush1.xpose.msra.mxu0 0.0
    %598 = vmatprep.subr.mxu0 0.0
    %599 = vmatpush1.xpose.msra.mxu0 0.0
    %600 = vmatprep.subr.mxu0 0.0
    %601 = vmatpush1.xpose.msra.mxu0 0.0
    %602 = vmatprep.subr.mxu0 0.0
    %603 = vmatpush1.xpose.msra.mxu0 0.0
    %604 = vmatprep.subr.mxu0 0.0
    %605 = vmatpush1.xpose.msra.mxu0 0.0
    %606 = vmatprep.subr.mxu0 0.0
    %607 = vmatpush1.xpose.msra.mxu0 0.0
    %608 = vmatprep.subr.mxu0 0.0
    %609 = vmatpush1.xpose.msra.mxu0 0.0
    %610 = vmatprep.subr.mxu0 0.0
    %611 = vmatpush1.xpose.msra.mxu0 0.0
    %612 = vmatprep.subr.mxu0 0.0
    %613 = vmatpush1.xpose.msra.mxu0 0.0
    %614 = vmatprep.subr.mxu0 0.0
    %615 = vmatpush1.xpose.msra.mxu0 0.0
    %616 = vmatprep.mubr.f32.mxu0 0.0
    %617 = vmatmul.mubr.f32.gmra.mrb[0].mxu0 %v502
    %v618 = vpop.f32.mrb[0].mxu0
    %v619 = vadd.f32 %v499, %v618
    %v620 = vpop.f32.mrb[0].mxu0
    %621 = vdwg.mxu0
    %622 = vst [vmem:[#allocation3] sm:$0x1] %v619
    // Predicated region
    $region30: #{tpu_custom_call.1} parent=1 // pred_check
      _
    $region31: #{tpu_custom_call.1} parent=1 // pred_check_branch
      %624 = sbr.rel (0) target = $region33
    $region32: #{tpu_custom_call.1} parent=1 // pred_region
      %s626 = ssub.s32 16, 16
      %627 = vsyncadd [#allocation4], %s626
      %s629 = sshll.u32 [#allocation3], 4
      %s630 = int_to_ptr.vmem [resolvable:$true] %s629
      %632 = dma.vmem_to_hbm [thread:$0]  %s630, 16, %s7, [#allocation4]
    $region33: #{tpu_custom_call.1} parent=1 // pred_fallthru
      _
    // Predicated region
    $region34: #{tpu_custom_call.1} parent=1 // pred_check
      _
    $region35: #{tpu_custom_call.1} parent=1 // pred_check_branch
      %634 = sbr.rel (0) target = $region37
    $region36: #{tpu_custom_call.1} parent=1 // pred_region
      %635 = dma.done [#allocation4], 16
    $region37: #{tpu_custom_call.1} parent=1 // pred_fallthru
      _
    %636 = vsyncpa [#allocation4], 1

</llo_original>
